<compile_context>
chip_gen: v7x
topology: tpu7x:2x2x1
jax: 0.10.0
libtpu: 0.0.40
codegen_flags: <defaults>
</compile_context>

<pallas_src>
import functools

import jax
import jax.numpy as jnp
from jax import lax
from jax.experimental import pallas as pl
from jax.experimental.pallas import tpu as pltpu


def _round_up(x, m):
    return ((x + m - 1) // m) * m


def _leaky(v):
    # LeakyReLU(0.1): for slope < 1, max(v, 0.1*v) == where(v > 0, v, 0.1*v)
    # but uses 2 VALU ops (mul+max) instead of 3 (cmp+mul+select).
    return jnp.maximum(v, 0.1 * v)


# ---------------------------------------------------------------------------
# RESIDENT path: grid = (batch_blocks,), all weights live in VMEM, layers
# statically unrolled inside the kernel (no per-layer grid overhead, weights
# streamed from HBM at most once).
# ---------------------------------------------------------------------------
def _netd_resident_kernel(x_ref, w0_ref, b0_ref, wh_ref, bh_ref, wo_ref, bo_ref,
                          out_ref, *, n_layers, act_dtype):
    w0 = w0_ref[...]                                        # (H, in_dim)
    # (H, in) x (tb, in) contracted on `in` -> (H, tb); MXU consumes the transposed
    # operand natively, so no wrapper-side x.T is needed.
    h = lax.dot_general(w0, x_ref[...].astype(w0.dtype),
                        dimension_numbers=(((1,), (1,)), ((), ())),
                        preferred_element_type=jnp.float32)
    h = _leaky(h + b0_ref[...]).astype(act_dtype)           # bias (H, 1) lane-broadcast

    for l in range(n_layers):                               # static unroll; weights resident
        w = wh_ref[l]                                       # (H, H)
        h = jnp.dot(w, h.astype(w.dtype), preferred_element_type=jnp.float32)
        h = _leaky(h + bh_ref[l]).astype(act_dtype)

    # (H,1) * (H,TB) summed over H -> (1,TB): VPU multiply + sublane reduce keeps the
    # MXU free and the store lane-dense (batch on the lane axis).
    o = jnp.sum(wo_ref[...].astype(jnp.float32) * h.astype(jnp.float32),
                axis=0, keepdims=True)
    out_ref[...] = (o + bo_ref[...]).astype(out_ref.dtype)


# ---------------------------------------------------------------------------
# STREAMED path: grid = (batch_blocks, layer_steps), one (H, H) weight slab
# double-buffered per layer step; activations persist in VMEM scratch.
# ---------------------------------------------------------------------------
def _netd_streamed_kernel(x_ref, w0_ref, b0_ref, wh_ref, bh_ref, wo_ref, bo_ref,
                          out_ref, h_ref, *, n_layers):
    l = pl.program_id(1)

    # ---- input layer, only on the first layer step ----
    @pl.when(l == 0)
    def _():
        w0 = w0_ref[...]                                    # (H, in_dim)
        h = lax.dot_general(w0, x_ref[...].astype(w0.dtype),
                            dimension_numbers=(((1,), (1,)), ((), ())),
                            preferred_element_type=jnp.float32)
        h_ref[...] = _leaky(h + b0_ref[...]).astype(h_ref.dtype)

    # ---- hidden layer l: one streamed (H, H) slab per step, biases resident ----
    if n_layers > 0:                                        # static; omitted entirely if 0
        w = wh_ref[0]                                       # (H, H) current layer's weights
        h = jnp.dot(w, h_ref[...].astype(w.dtype), preferred_element_type=jnp.float32)
        h_ref[...] = _leaky(h + bh_ref[l]).astype(h_ref.dtype)

    # ---- output layer: lane-dense (1, TB) result, only on the last layer step ----
    @pl.when(l == pl.num_programs(1) - 1)
    def _():
        o = jnp.sum(wo_ref[...].astype(jnp.float32) * h_ref[...].astype(jnp.float32),
                    axis=0, keepdims=True)
        out_ref[...] = (o + bo_ref[...]).astype(out_ref.dtype)


def netd_forward(x, params, *, n_layers, block_b=1024, resident_weight_budget=8 << 20):
    """x: (B, in_dim) float32.  params: dict laid out by make_netd_params.

    Returns (B, 1) float32, matching nn.Linear(n_units, 1)."""
    B, in_dim = x.shape
    H = params["w0"].shape[0]
    L = max(n_layers, 1)
    w_dtype = params["w0"].dtype
    w_bytes = jnp.dtype(w_dtype).itemsize
    act_dtype = jnp.bfloat16 if w_dtype == jnp.bfloat16 else jnp.float32
    act_bytes = jnp.dtype(act_dtype).itemsize

    wh_bytes = n_layers * H * H * w_bytes
    resident = wh_bytes <= resident_weight_budget

    # Lane-dense batch tiling: pad B up so every block is a full multiple of 128 lanes
    # (unmasked vst, no degenerate MXU N dim).  Streamed path prefers bigger tiles so the
    # per-weight-byte arithmetic intensity clears the HBM ridge on v5e/v6e.
    lane_mult = 128 if resident else 256
    b_pad0 = _round_up(B, 128)
    tb = min(b_pad0, _round_up(block_b, lane_mult))
    nb = pl.cdiv(b_pad0, tb)
    # Megacore: only engages if the batch grid dim >= 2; split when the device exposes
    # more than one TensorCore (v7x).  Harmless no-op elsewhere.
    if nb == 1 and b_pad0 >= 256 and getattr(jax.devices()[0], "num_cores", 1) > 1:
        tb = _round_up(b_pad0 // 2, 128)
        nb = pl.cdiv(b_pad0, tb)
    b_full = nb * tb
    xp = jnp.pad(x, ((0, b_full - B), (0, 0))) if b_full != B else x

    if resident:
        grid_spec = pltpu.PrefetchScalarGridSpec(
            num_scalar_prefetch=0,
            grid=(nb,),
            in_specs=[
                pl.BlockSpec((tb, in_dim), lambda i: (i, 0)),    # x batch block (untransposed)
                pl.BlockSpec((H, in_dim),  lambda i: (0, 0)),    # W0 (resident)
                pl.BlockSpec((H, 1),       lambda i: (0, 0)),    # b0
                pl.BlockSpec((L, H, H),    lambda i: (0, 0, 0)), # all hidden weights resident
                pl.BlockSpec((L, H, 1),    lambda i: (0, 0, 0)), # all hidden biases resident
                pl.BlockSpec((H, 1),       lambda i: (0, 0)),    # w_out
                pl.BlockSpec((1, 1),       lambda i: (0, 0)),    # b_out
            ],
            out_specs=pl.BlockSpec((1, tb), lambda i: (0, i)),   # lane-dense output tile
        )
        kernel = functools.partial(_netd_resident_kernel,
                                   n_layers=n_layers, act_dtype=act_dtype)
        dim_sem = ("parallel",)
        vmem_need = (2 * tb * in_dim * 4
                     + (H * in_dim + L * H * H + H) * w_bytes
                     + (H + L * H + 1) * 4
                     + 2 * tb * 4
                     + 2 * H * tb * act_bytes)
    else:
        grid_spec = pltpu.PrefetchScalarGridSpec(
            num_scalar_prefetch=0,
            grid=(nb, L),
            in_specs=[
                pl.BlockSpec((tb, in_dim), lambda i, l: (i, 0)),
                pl.BlockSpec((H, in_dim),  lambda i, l: (0, 0)),
                pl.BlockSpec((H, 1),       lambda i, l: (0, 0)),
                pl.BlockSpec((1, H, H),    lambda i, l: (l, 0, 0)),  # streamed weight slab
                pl.BlockSpec((L, H, 1),    lambda i, l: (0, 0, 0)),  # biases resident (tiny)
                pl.BlockSpec((H, 1),       lambda i, l: (0, 0)),
                pl.BlockSpec((1, 1),       lambda i, l: (0, 0)),
            ],
            out_specs=pl.BlockSpec((1, tb), lambda i, l: (0, i)),
            scratch_shapes=[pltpu.VMEM((H, tb), act_dtype)],         # resident activations
        )
        kernel = functools.partial(_netd_streamed_kernel, n_layers=n_layers)
        dim_sem = ("parallel", "arbitrary")
        # NOTE: the double-buffered (H, H) slab term does NOT shrink with block_b;
        # above ~H=2.4-3.4K on v7x (64 MiB VMEM), tile the weight along output rows.
        vmem_need = (2 * tb * in_dim * 4
                     + 2 * H * H * w_bytes
                     + H * in_dim * w_bytes
                     + (H + L * H + 1) * 4 + H * w_bytes
                     + 2 * tb * 4
                     + H * tb * act_bytes)

    vmem_limit = None
    if vmem_need > (16 << 20):        # above the most conservative (v5e) scoped default
        try:
            phys = pltpu.get_tpu_info().vmem_capacity_bytes
        except Exception:
            phys = 64 << 20           # v7x is the smallest current part
        vmem_limit = min(int(vmem_need * 1.5) + (2 << 20), phys - (8 << 20))

    flops = 2 * b_full * H * in_dim + 2 * n_layers * b_full * H * H + 2 * b_full * H
    w_total_bytes = ((H * in_dim + n_layers * H * H + H) * w_bytes
                     + (H + n_layers * H + 1) * 4)
    bytes_accessed = (b_full * in_dim * 4 + b_full * 4
                      + (w_total_bytes if resident else w_total_bytes * nb))
    cost = pl.CostEstimate(flops=flops, transcendentals=0, bytes_accessed=bytes_accessed)

    out_t = pl.pallas_call(
        kernel,
        out_shape=jax.ShapeDtypeStruct((1, b_full), jnp.float32),
        grid_spec=grid_spec,
        compiler_params=pltpu.CompilerParams(
            dimension_semantics=dim_sem, vmem_limit_bytes=vmem_limit),
        cost_estimate=cost,
    )(xp, params["w0"], params["b0"], params["wh"], params["bh"],
      params["wo"], params["bo"])

    return out_t[:, :B].T                                    # (B, 1)


# ---------------------------------------------------------------------------
# Parameter setup (plain JAX glue): deterministic init + spectral normalization
# ---------------------------------------------------------------------------
def _linear_init(key, fan_in, fan_out):
    # PyTorch nn.Linear default init: U(-1/sqrt(fan_in), 1/sqrt(fan_in))
    kw, kb = jax.random.split(key)
    bound = 1.0 / jnp.sqrt(fan_in)
    w = jax.random.uniform(kw, (fan_out, fan_in), jnp.float32, -bound, bound)
    b = jax.random.uniform(kb, (fan_out,), jnp.float32, -bound, bound)
    return w, b


def _spectral_norm(w, key, n_power_iterations=2, eps=1e-12):
    # w: (out, in).  Matches torch.nn.utils.spectral_norm weight rescaling.
    out_dim, _ = w.shape
    u = jax.random.normal(key, (out_dim,), jnp.float32)
    u = u / jnp.maximum(jnp.linalg.norm(u), eps)
    for _ in range(n_power_iterations):
        v = w.T @ u
        v = v / jnp.maximum(jnp.linalg.norm(v), eps)
        u = w @ v
        u = u / jnp.maximum(jnp.linalg.norm(u), eps)
    sigma = u @ (w @ v)
    return w / sigma


def make_netd_params(key, in_dim, n_units, n_layers, param_dtype=jnp.float32):
    """Builds kernel-ready params.  param_dtype=jnp.bfloat16 halves weight HBM bytes and
    the activation scratch (biases stay f32; accumulation is always f32)."""
    keys = jax.random.split(key, 2 * (n_layers + 2))
    w0, b0 = _linear_init(keys[0], in_dim, n_units)
    w0 = _spectral_norm(w0, keys[1])
    wh_list, bh_list = [], []
    for l in range(n_layers):
        w, b = _linear_init(keys[2 + 2 * l], n_units, n_units)
        w = _spectral_norm(w, keys[3 + 2 * l])
        wh_list.append(w)
        bh_list.append(b)
    wo, bo = _linear_init(keys[2 + 2 * n_layers], n_units, 1)
    wo = _spectral_norm(wo, keys[3 + 2 * n_layers])

    if n_layers > 0:
        wh = jnp.stack(wh_list)                            # (L, H, H), torch (out,in) layout
        bh = jnp.stack(bh_list)[:, :, None]                # (L, H, 1)
    else:
        # dummy single slab so zero-extent operands never reach Mosaic
        wh = jnp.zeros((1, n_units, n_units), jnp.float32)
        bh = jnp.zeros((1, n_units, 1), jnp.float32)

    return {
        "w0": w0.astype(param_dtype),                      # (H, in_dim)
        "b0": b0[:, None],                                 # (H, 1) f32
        "wh": wh.astype(param_dtype),                      # (max(L,1), H, H)
        "bh": bh,                                          # (max(L,1), H, 1) f32
        "wo": wo.T.astype(param_dtype),                    # (H, 1)
        "bo": bo[None, :],                                 # (1, 1) f32
    }


def netd_reference(x, params, n_layers):
    """Pure-JAX reference, same orientation / accumulation dtypes as the kernel."""
    w_dtype = params["w0"].dtype
    act_dtype = jnp.bfloat16 if w_dtype == jnp.bfloat16 else jnp.float32
    def leaky(v):
        return jnp.maximum(v, 0.1 * v)
    h = lax.dot_general(params["w0"], x.astype(w_dtype),
                        dimension_numbers=(((1,), (1,)), ((), ())),
                        preferred_element_type=jnp.float32)
    h = leaky(h + params["b0"]).astype(act_dtype)
    for l in range(n_layers):
        h = jnp.dot(params["wh"][l], h.astype(w_dtype), preferred_element_type=jnp.float32)
        h = leaky(h + params["bh"][l]).astype(act_dtype)
    o = jnp.sum(params["wo"].astype(jnp.float32) * h.astype(jnp.float32),
                axis=0, keepdims=True)
    return (o + params["bo"]).T                            # (B, 1)


if __name__ == "__main__":
    # Small shapes consistent with the module: batch=8, in_dim=16,
    # disc_n_units=32, disc_n_layers=2.
    B, IN_DIM, N_UNITS, N_LAYERS = 8, 16, 32, 2

    key = jax.random.PRNGKey(0)
    k_x, k_p = jax.random.split(key)
    x = jax.random.normal(k_x, (B, IN_DIM), jnp.float32)
    params = make_netd_params(k_p, IN_DIM, N_UNITS, N_LAYERS)

    out = netd_forward(x, params, n_layers=N_LAYERS)
    out = jax.block_until_ready(out)

    ref = netd_reference(x, params, N_LAYERS)
    assert out.shape == (B, 1), out.shape
    assert jnp.allclose(out, ref, atol=1e-4, rtol=1e-4), "kernel/reference mismatch"

    # Also exercise the streamed (large-H) code path with a tiny weight budget.
    out_s = netd_forward(x, params, n_layers=N_LAYERS, resident_weight_budget=0)
    out_s = jax.block_until_ready(out_s)
    assert jnp.allclose(out_s, ref, atol=1e-4, rtol=1e-4), "streamed kernel mismatch"

    print("KERNEL_OK")
</pallas_src>

<mosaic_0001>
module attributes {stable_mosaic.version = 11 : i64} {
  func.func @_netd_resident_kernel(%arg0: i32, %arg1: memref<128x16xf32, #tpu.memory_space<vmem>>, %arg2: memref<32x16xf32, #tpu.memory_space<vmem>>, %arg3: memref<32x1xf32, #tpu.memory_space<vmem>>, %arg4: memref<2x32x32xf32, #tpu.memory_space<vmem>>, %arg5: memref<2x32x1xf32, #tpu.memory_space<vmem>>, %arg6: memref<32x1xf32, #tpu.memory_space<vmem>>, %arg7: memref<1x1xf32, #tpu.memory_space<vmem>>, %arg8: memref<1x128xf32, #tpu.memory_space<vmem>>) attributes {dimension_semantics = [#tpu.dimension_semantics<parallel>], iteration_bounds = array<i64: 1>, scalar_prefetch = 0 : i64, scratch_operands = 0 : i64, tpu.core_type = #tpu.core_type<tc>, window_params = [{transform_indices = @transform_0, window_bounds = array<i64: 128, 16>}, {pipeline_mode = #tpu.pipeline_mode<synchronous>, transform_indices = @transform_1, window_bounds = array<i64: 32, 16>}, {pipeline_mode = #tpu.pipeline_mode<synchronous>, transform_indices = @transform_2, window_bounds = array<i64: 32, 1>}, {pipeline_mode = #tpu.pipeline_mode<synchronous>, transform_indices = @transform_3, window_bounds = array<i64: 2, 32, 32>}, {pipeline_mode = #tpu.pipeline_mode<synchronous>, transform_indices = @transform_4, window_bounds = array<i64: 2, 32, 1>}, {pipeline_mode = #tpu.pipeline_mode<synchronous>, transform_indices = @transform_5, window_bounds = array<i64: 32, 1>}, {pipeline_mode = #tpu.pipeline_mode<synchronous>, transform_indices = @transform_6, window_bounds = array<i64: 1, 1>}, {transform_indices = @transform_7, window_bounds = array<i64: 1, 128>}]} {
    %c0 = arith.constant 0 : index
    %c0_0 = arith.constant 0 : index
    %0 = vector.load %arg2[%c0, %c0_0] : memref<32x16xf32, #tpu.memory_space<vmem>>, vector<32x16xf32>
    %c0_1 = arith.constant 0 : index
    %c0_2 = arith.constant 0 : index
    %1 = vector.load %arg1[%c0_1, %c0_2] : memref<128x16xf32, #tpu.memory_space<vmem>>, vector<128x16xf32>
    %cst = arith.constant dense<0.000000e+00> : vector<32x128xf32>
    %2 = tpu.matmul %0, %1, %cst {dimension_numbers = #tpu.dot_dimension_numbers<[1], [1], [0], [0], [0, 0, 1, 0], [], []>} : vector<32x16xf32>, vector<128x16xf32>, vector<32x128xf32> -> vector<32x128xf32>
    %c0_3 = arith.constant 0 : index
    %c0_4 = arith.constant 0 : index
    %3 = vector.load %arg3[%c0_3, %c0_4] : memref<32x1xf32, #tpu.memory_space<vmem>>, vector<32x1xf32>
    %4 = vector.broadcast %3 : vector<32x1xf32> to vector<32x128xf32>
    %5 = arith.addf %2, %4 : vector<32x128xf32>
    %cst_5 = arith.constant 1.000000e-01 : f32
    %6 = vector.broadcast %cst_5 : f32 to vector<32x128xf32>
    %7 = arith.mulf %6, %5 : vector<32x128xf32>
    %8 = arith.maximumf %5, %7 : vector<32x128xf32>
    %c0_6 = arith.constant 0 : index
    %c0_7 = arith.constant 0 : index
    %c0_8 = arith.constant 0 : index
    %9 = vector.load %arg4[%c0_6, %c0_7, %c0_8] : memref<2x32x32xf32, #tpu.memory_space<vmem>>, vector<1x32x32xf32>
    %10 = vector.shape_cast %9 : vector<1x32x32xf32> to vector<32x32xf32>
    %cst_9 = arith.constant dense<0.000000e+00> : vector<32x128xf32>
    %11 = tpu.matmul %10, %8, %cst_9 {dimension_numbers = #tpu.dot_dimension_numbers<[1], [0], [0], [1], [0, 0, 1, 1], [], []>} : vector<32x32xf32>, vector<32x128xf32>, vector<32x128xf32> -> vector<32x128xf32>
    %c0_10 = arith.constant 0 : index
    %c0_11 = arith.constant 0 : index
    %c0_12 = arith.constant 0 : index
    %12 = vector.load %arg5[%c0_10, %c0_11, %c0_12] : memref<2x32x1xf32, #tpu.memory_space<vmem>>, vector<1x32x1xf32>
    %13 = vector.shape_cast %12 : vector<1x32x1xf32> to vector<32x1xf32>
    %14 = vector.broadcast %13 : vector<32x1xf32> to vector<32x128xf32>
    %15 = arith.addf %11, %14 : vector<32x128xf32>
    %cst_13 = arith.constant 1.000000e-01 : f32
    %16 = vector.broadcast %cst_13 : f32 to vector<32x128xf32>
    %17 = arith.mulf %16, %15 : vector<32x128xf32>
    %18 = arith.maximumf %15, %17 : vector<32x128xf32>
    %c1 = arith.constant 1 : index
    %c0_14 = arith.constant 0 : index
    %c0_15 = arith.constant 0 : index
    %19 = vector.load %arg4[%c1, %c0_14, %c0_15] : memref<2x32x32xf32, #tpu.memory_space<vmem>>, vector<1x32x32xf32>
    %20 = vector.shape_cast %19 : vector<1x32x32xf32> to vector<32x32xf32>
    %cst_16 = arith.constant dense<0.000000e+00> : vector<32x128xf32>
    %21 = tpu.matmul %20, %18, %cst_16 {dimension_numbers = #tpu.dot_dimension_numbers<[1], [0], [0], [1], [0, 0, 1, 1], [], []>} : vector<32x32xf32>, vector<32x128xf32>, vector<32x128xf32> -> vector<32x128xf32>
    %c1_17 = arith.constant 1 : index
    %c0_18 = arith.constant 0 : index
    %c0_19 = arith.constant 0 : index
    %22 = vector.load %arg5[%c1_17, %c0_18, %c0_19] : memref<2x32x1xf32, #tpu.memory_space<vmem>>, vector<1x32x1xf32>
    %23 = vector.shape_cast %22 : vector<1x32x1xf32> to vector<32x1xf32>
    %24 = vector.broadcast %23 : vector<32x1xf32> to vector<32x128xf32>
    %25 = arith.addf %21, %24 : vector<32x128xf32>
    %cst_20 = arith.constant 1.000000e-01 : f32
    %26 = vector.broadcast %cst_20 : f32 to vector<32x128xf32>
    %27 = arith.mulf %26, %25 : vector<32x128xf32>
    %28 = arith.maximumf %25, %27 : vector<32x128xf32>
    %c0_21 = arith.constant 0 : index
    %c0_22 = arith.constant 0 : index
    %29 = vector.load %arg6[%c0_21, %c0_22] : memref<32x1xf32, #tpu.memory_space<vmem>>, vector<32x1xf32>
    %30 = vector.broadcast %29 : vector<32x1xf32> to vector<32x128xf32>
    %31 = arith.mulf %30, %28 : vector<32x128xf32>
    %cst_23 = arith.constant dense<0.000000e+00> : vector<128xf32>
    %32 = vector.multi_reduction <add>, %31, %cst_23 [0] : vector<32x128xf32> to vector<128xf32>
    %33 = vector.shape_cast %32 : vector<128xf32> to vector<1x128xf32>
    %c0_24 = arith.constant 0 : index
    %c0_25 = arith.constant 0 : index
    %34 = vector.load %arg7[%c0_24, %c0_25] : memref<1x1xf32, #tpu.memory_space<vmem>>, vector<1x1xf32>
    %35 = vector.broadcast %34 : vector<1x1xf32> to vector<1x128xf32>
    %36 = arith.addf %33, %35 : vector<1x128xf32>
    %c0_26 = arith.constant 0 : index
    %c0_27 = arith.constant 0 : index
    %37 = vector.load %arg8[%c0_26, %c0_27] : memref<1x128xf32, #tpu.memory_space<vmem>>, vector<1x128xf32>
    tpu.vector_store %arg8[%c0_26, %c0_27], %36 {strides = array<i32>} : memref<1x128xf32, #tpu.memory_space<vmem>>, vector<1x128xf32>,
    return
  }
  func.func @transform_0(%arg0: i32) -> (i32, i32) {
    %c0_i32 = arith.constant 0 : i32
    %c0_i32_0 = arith.constant 0 : i32
    return %arg0, %c0_i32 : i32, i32
  }
  func.func @transform_1(%arg0: i32) -> (i32, i32) {
    %c0_i32 = arith.constant 0 : i32
    %c0_i32_0 = arith.constant 0 : i32
    %c0_i32_1 = arith.constant 0 : i32
    return %c0_i32, %c0_i32_0 : i32, i32
  }
  func.func @transform_2(%arg0: i32) -> (i32, i32) {
    %c0_i32 = arith.constant 0 : i32
    %c0_i32_0 = arith.constant 0 : i32
    %c0_i32_1 = arith.constant 0 : i32
    return %c0_i32, %c0_i32_0 : i32, i32
  }
  func.func @transform_3(%arg0: i32) -> (i32, i32, i32) {
    %c0_i32 = arith.constant 0 : i32
    %c0_i32_0 = arith.constant 0 : i32
    %c0_i32_1 = arith.constant 0 : i32
    %c0_i32_2 = arith.constant 0 : i32
    return %c0_i32, %c0_i32_0, %c0_i32_1 : i32, i32, i32
  }
  func.func @transform_4(%arg0: i32) -> (i32, i32, i32) {
    %c0_i32 = arith.constant 0 : i32
    %c0_i32_0 = arith.constant 0 : i32
    %c0_i32_1 = arith.constant 0 : i32
    %c0_i32_2 = arith.constant 0 : i32
    return %c0_i32, %c0_i32_0, %c0_i32_1 : i32, i32, i32
  }
  func.func @transform_5(%arg0: i32) -> (i32, i32) {
    %c0_i32 = arith.constant 0 : i32
    %c0_i32_0 = arith.constant 0 : i32
    %c0_i32_1 = arith.constant 0 : i32
    return %c0_i32, %c0_i32_0 : i32, i32
  }
  func.func @transform_6(%arg0: i32) -> (i32, i32) {
    %c0_i32 = arith.constant 0 : i32
    %c0_i32_0 = arith.constant 0 : i32
    %c0_i32_1 = arith.constant 0 : i32
    return %c0_i32, %c0_i32_0 : i32, i32
  }
  func.func @transform_7(%arg0: i32) -> (i32, i32) {
    %c0_i32 = arith.constant 0 : i32
    %c0_i32_0 = arith.constant 0 : i32
    return %c0_i32, %arg0 : i32, i32
  }
}

</mosaic_0001>

<llo_original>
// kernel: tpu_custom_call.1
$region0: #{tpu_custom_call.1}
  #allocation0 [shape = 'u32[]', space=smem, size = 0x4, offset = 0x4, fixed_abs, tag = 'smem constant byte address 0x4 - core index']
  #allocation1 [shape = 'u32[144,128]{1,0:T(1,128)}', space=vmem, size = 0x12000, scoped, tag = 'internal scratch']
  #allocation2 [shape = 'f32[1,1]{1,0:T(1,128)S(1)}', space=vmem, size = 0x200, scoped, tag = 'scoped memory for tpu_custom_call.1']
  %s0 = inlined_call_operand.vmem [shape: f32[128,16], index: 0, kind: input, shape index: {}]
  %s1 = inlined_call_operand.vmem [shape: f32[32,16], index: 1, kind: input, shape index: {}]
  %s2 = inlined_call_operand.vmem [shape: f32[32,1], index: 2, kind: input, shape index: {}]
  %s3 = inlined_call_operand.vmem [shape: f32[2,32,32], index: 3, kind: input, shape index: {}]
  %s4 = inlined_call_operand.vmem [shape: f32[2,32,1], index: 4, kind: input, shape index: {}]
  %s5 = inlined_call_operand.vmem [shape: f32[32,1], index: 5, kind: input, shape index: {}]
  %s6 = inlined_call_operand.<no memory space> [shape: f32[1,1], index: 6, kind: input, shape index: {}]
  %s7 = inlined_call_operand.hbm [shape: f32[1,128], index: 7, kind: output, shape index: {}]
  %s8 = sld [smem:[#allocation0]]
  $region38: #{tpu_custom_call.1} parent=0
    _
  %s10 = ssub.s32 1, %s8
  %s11 = scalar_select 0, %s10, %s8
  %v12 = vstv %s6
  %13 = vst [vmem:[#allocation2] sm:$0x1] %v12
  $region1: #{tpu_custom_call.1} parent=0
    #allocation3 [shape = 'u8[512]{0}', space=vmem, size = 0x400, scoped, tag = 'output window, operand 0, single buffered']
    #allocation4 [shape = 's32[1]{0}', space=sflag, size = 0x4, scoped, tag = 'scoped memory for tpu_custom_call.1']
    %14 = vsyncpa [#allocation4], 0
    // Predicated region
    $region2: #{tpu_custom_call.1} parent=1 // pred_check
      _
    $region3: #{tpu_custom_call.1} parent=1 // pred_check_branch
      %16 = sbr.rel (0) target = $region5
    $region4: #{tpu_custom_call.1} parent=1 // pred_region
      _
    $region5: #{tpu_custom_call.1} parent=1 // pred_fallthru
      _
    // Predicated region
    $region6: #{tpu_custom_call.1} parent=1 // pred_check
      _
    $region7: #{tpu_custom_call.1} parent=1 // pred_check_branch
      %18 = sbr.rel (0) target = $region9
    $region8: #{tpu_custom_call.1} parent=1 // pred_region
      _
    $region9: #{tpu_custom_call.1} parent=1 // pred_fallthru
      _
    // Predicated region
    $region10: #{tpu_custom_call.1} parent=1 // pred_check
      _
    $region11: #{tpu_custom_call.1} parent=1 // pred_check_branch
      %20 = sbr.rel (0) target = $region13
    $region12: #{tpu_custom_call.1} parent=1 // pred_region
      _
    $region13: #{tpu_custom_call.1} parent=1 // pred_fallthru
      _
    // Predicated region
    $region14: #{tpu_custom_call.1} parent=1 // pred_check
      _
    $region15: #{tpu_custom_call.1} parent=1 // pred_check_branch
      %22 = sbr.rel (0) target = $region17
    $region16: #{tpu_custom_call.1} parent=1 // pred_region
      _
    $region17: #{tpu_custom_call.1} parent=1 // pred_fallthru
      _
    // Predicated region
    $region18: #{tpu_custom_call.1} parent=1 // pred_check
      _
    $region19: #{tpu_custom_call.1} parent=1 // pred_check_branch
      %24 = sbr.rel (0) target = $region21
    $region20: #{tpu_custom_call.1} parent=1 // pred_region
      _
    $region21: #{tpu_custom_call.1} parent=1 // pred_fallthru
      _
    // Predicated region
    $region22: #{tpu_custom_call.1} parent=1 // pred_check
      _
    $region23: #{tpu_custom_call.1} parent=1 // pred_check_branch
      %26 = sbr.rel (0) target = $region25
    $region24: #{tpu_custom_call.1} parent=1 // pred_region
      _
    $region25: #{tpu_custom_call.1} parent=1 // pred_fallthru
      _
    // Predicated region
    $region26: #{tpu_custom_call.1} parent=1 // pred_check
      _
    $region27: #{tpu_custom_call.1} parent=1 // pred_check_branch
      %28 = sbr.rel (0) target = $region29
    $region28: #{tpu_custom_call.1} parent=1 // pred_region
      _
    $region29: #{tpu_custom_call.1} parent=1 // pred_fallthru
      _
    %v29 = vld [vmem:[%s1] sm:$0xff]
    %v30 = vld [vmem:[%s1 + $0x8] sm:$0xff]
    %v31 = vld [vmem:[%s1 + $0x10] sm:$0xff]
    %v32 = vld [vmem:[%s1 + $0x18] sm:$0xff]
    %v33 = vld [vmem:[%s0] sm:$0xff]
    %v34 = vld [vmem:[%s0 + $0x8] sm:$0xff]
    %v35 = vld [vmem:[%s0 + $0x10] sm:$0xff]
    %v36 = vld [vmem:[%s0 + $0x18] sm:$0xff]
    %v37 = vld [vmem:[%s0 + $0x20] sm:$0xff]
    %v38 = vld [vmem:[%s0 + $0x28] sm:$0xff]
    %v39 = vld [vmem:[%s0 + $0x30] sm:$0xff]
    %v40 = vld [vmem:[%s0 + $0x38] sm:$0xff]
    %v41 = vld [vmem:[%s0 + $0x40] sm:$0xff]
    %v42 = vld [vmem:[%s0 + $0x48] sm:$0xff]
    %v43 = vld [vmem:[%s0 + $0x50] sm:$0xff]
    %v44 = vld [vmem:[%s0 + $0x58] sm:$0xff]
    %v45 = vld [vmem:[%s0 + $0x60] sm:$0xff]
    %v46 = vld [vmem:[%s0 + $0x68] sm:$0xff]
    %v47 = vld [vmem:[%s0 + $0x70] sm:$0xff]
    %v48 = vld [vmem:[%s0 + $0x78] sm:$0xff]
    %v49 = vld [vmem:[%s2] sm:$0xff]
    %v50 = vld [vmem:[%s2 + $0x8] sm:$0xff]
    %v51 = vld [vmem:[%s2 + $0x10] sm:$0xff]
    %v52 = vld [vmem:[%s2 + $0x18] sm:$0xff]
    %54 = vset.pattern.permute.xlu0 0
    %55 = vperm.xlu0 %54, %v49
    %v56 = vpop.permute.xlu0 %55
    %59 = vset.pattern.permute.xlu0 0
    %60 = vperm.xlu0 %59, %v50
    %v61 = vpop.permute.xlu0 %60
    %64 = vset.pattern.permute.xlu0 0
    %65 = vperm.xlu0 %64, %v51
    %v66 = vpop.permute.xlu0 %65
    %69 = vset.pattern.permute.xlu0 0
    %70 = vperm.xlu0 %69, %v52
    %v71 = vpop.permute.xlu0 %70
    %vm73 = vcmask 130048
    %v75 = vsel %vm73, %v29, 0
    %v78 = vsel %vm73, %v30, 0
    %v81 = vsel %vm73, %v31, 0
    %v84 = vsel %vm73, %v32, 0
    %v87 = vsel %vm73, %v33, 0
    %v90 = vsel %vm73, %v34, 0
    %v93 = vsel %vm73, %v35, 0
    %v96 = vsel %vm73, %v36, 0
    %v99 = vsel %vm73, %v37, 0
    %v102 = vsel %vm73, %v38, 0
    %v105 = vsel %vm73, %v39, 0
    %v108 = vsel %vm73, %v40, 0
    %v111 = vsel %vm73, %v41, 0
    %v114 = vsel %vm73, %v42, 0
    %v117 = vsel %vm73, %v43, 0
    %v120 = vsel %vm73, %v44, 0
    %v123 = vsel %vm73, %v45, 0
    %v126 = vsel %vm73, %v46, 0
    %v129 = vsel %vm73, %v47, 0
    %v132 = vsel %vm73, %v48, 0
    %134 = vmatprep.subr.mxu0 0.0
    %135 = vmatpush1.xpose.msra.mxu0 %v87
    %136 = vmatprep.subr.mxu0 0.0
    %137 = vmatpush1.xpose.msra.mxu0 %v90
    %138 = vmatprep.subr.mxu0 0.0
    %139 = vmatpush1.xpose.msra.mxu0 %v93
    %140 = vmatprep.subr.mxu0 0.0
    %141 = vmatpush1.xpose.msra.mxu0 %v96
    %142 = vmatprep.subr.mxu0 0.0
    %143 = vmatpush1.xpose.msra.mxu0 %v99
    %144 = vmatprep.subr.mxu0 0.0
    %145 = vmatpush1.xpose.msra.mxu0 %v102
    %146 = vmatprep.subr.mxu0 0.0
    %147 = vmatpush1.xpose.msra.mxu0 %v105
    %148 = vmatprep.subr.mxu0 0.0
    %149 = vmatpush1.xpose.msra.mxu0 %v108
    %150 = vmatprep.subr.mxu0 0.0
    %151 = vmatpush1.xpose.msra.mxu0 %v111
    %152 = vmatprep.subr.mxu0 0.0
    %153 = vmatpush1.xpose.msra.mxu0 %v114
    %154 = vmatprep.subr.mxu0 0.0
    %155 = vmatpush1.xpose.msra.mxu0 %v117
    %156 = vmatprep.subr.mxu0 0.0
    %157 = vmatpush1.xpose.msra.mxu0 %v120
    %158 = vmatprep.subr.mxu0 0.0
    %159 = vmatpush1.xpose.msra.mxu0 %v123
    %160 = vmatprep.subr.mxu0 0.0
    %161 = vmatpush1.xpose.msra.mxu0 %v126
    %162 = vmatprep.subr.mxu0 0.0
    %163 = vmatpush1.xpose.msra.mxu0 %v129
    %164 = vmatprep.subr.mxu0 0.0
    %165 = vmatpush1.xpose.msra.mxu0 %v132
    %166 = vmatprep.subr.mxu0 0.0
    %167 = vmatpush1.xpose.msra.mxu0 0.0
    %168 = vmatprep.subr.mxu0 0.0
    %169 = vmatpush1.xpose.msra.mxu0 0.0
    %170 = vmatprep.subr.mxu0 0.0
    %171 = vmatpush1.xpose.msra.mxu0 0.0
    %172 = vmatprep.subr.mxu0 0.0
    %173 = vmatpush1.xpose.msra.mxu0 0.0
    %174 = vmatprep.subr.mxu0 0.0
    %175 = vmatpush1.xpose.msra.mxu0 0.0
    %176 = vmatprep.subr.mxu0 0.0
    %177 = vmatpush1.xpose.msra.mxu0 0.0
    %178 = vmatprep.subr.mxu0 0.0
    %179 = vmatpush1.xpose.msra.mxu0 0.0
    %180 = vmatprep.subr.mxu0 0.0
    %181 = vmatpush1.xpose.msra.mxu0 0.0
    %182 = vmatprep.subr.mxu0 0.0
    %183 = vmatpush1.xpose.msra.mxu0 0.0
    %184 = vmatprep.subr.mxu0 0.0
    %185 = vmatpush1.xpose.msra.mxu0 0.0
    %186 = vmatprep.subr.mxu0 0.0
    %187 = vmatpush1.xpose.msra.mxu0 0.0
    %188 = vmatprep.subr.mxu0 0.0
    %189 = vmatpush1.xpose.msra.mxu0 0.0
    %190 = vmatprep.subr.mxu0 0.0
    %191 = vmatpush1.xpose.msra.mxu0 0.0
    %192 = vmatprep.subr.mxu0 0.0
    %193 = vmatpush1.xpose.msra.mxu0 0.0
    %194 = vmatprep.subr.mxu0 0.0
    %195 = vmatpush1.xpose.msra.mxu0 0.0
    %196 = vmatprep.subr.mxu0 0.0
    %197 = vmatpush1.xpose.msra.mxu0 0.0
    %198 = vmatprep.mubr.f32.mxu0 0.0
    %199 = vmatmul.mubr.f32.gmra.mrb[0].mxu0 %v75
    %v200 = vpop.f32.mrb[0].mxu0
    %v201 = vadd.f32 %v56, %v200
    %v202 = vpop.f32.mrb[0].mxu0
    %203 = vmatprep.mubr.f32.mxu0 0.0
    %204 = vmatmul.mubr.f32.gmra.mrb[0].mxu0 %v78
    %v205 = vpop.f32.mrb[0].mxu0
    %v206 = vadd.f32 %v61, %v205
    %v207 = vpop.f32.mrb[0].mxu0
    %208 = vmatprep.mubr.f32.mxu0 0.0
    %209 = vmatmul.mubr.f32.gmra.mrb[0].mxu0 %v81
    %v210 = vpop.f32.mrb[0].mxu0
    %v211 = vadd.f32 %v66, %v210
    %v212 = vpop.f32.mrb[0].mxu0
    %213 = vmatprep.mubr.f32.mxu0 0.0
    %214 = vmatmul.mubr.f32.gmra.mrb[0].mxu0 %v84
    %v215 = vpop.f32.mrb[0].mxu0
    %v216 = vadd.f32 %v71, %v215
    %v217 = vpop.f32.mrb[0].mxu0
    %218 = vdwg.mxu0
    %v219 = vmul.f32 %v201, 0.1
    %v220 = vmul.f32 %v206, 0.1
    %v221 = vmul.f32 %v211, 0.1
    %v222 = vmul.f32 %v216, 0.1
    %v223 = vmax.f32 %v201, %v219
    %v224 = vmax.f32 %v206, %v220
    %v225 = vmax.f32 %v211, %v221
    %v226 = vmax.f32 %v216, %v222
    %v227 = vld [vmem:[%s3] sm:$0xff]
    %v228 = vld [vmem:[%s3 + $0x8] sm:$0xff]
    %v229 = vld [vmem:[%s3 + $0x10] sm:$0xff]
    %v230 = vld [vmem:[%s3 + $0x18] sm:$0xff]
    %v231 = vld [vmem:[%s4] sm:$0xff]
    %v232 = vld [vmem:[%s4 + $0x8] sm:$0xff]
    %v233 = vld [vmem:[%s4 + $0x10] sm:$0xff]
    %v234 = vld [vmem:[%s4 + $0x18] sm:$0xff]
    %236 = vset.pattern.permute.xlu0 0
    %237 = vperm.xlu0 %236, %v231
    %v238 = vpop.permute.xlu0 %237
    %241 = vset.pattern.permute.xlu0 0
    %242 = vperm.xlu0 %241, %v232
    %v243 = vpop.permute.xlu0 %242
    %246 = vset.pattern.permute.xlu0 0
    %247 = vperm.xlu0 %246, %v233
    %v248 = vpop.permute.xlu0 %247
    %251 = vset.pattern.permute.xlu0 0
    %252 = vperm.xlu0 %251, %v234
    %v253 = vpop.permute.xlu0 %252
    %vm255 = vcmask 261120
    %v257 = vsel %vm255, %v227, 0
    %v260 = vsel %vm255, %v228, 0
    %v263 = vsel %vm255, %v229, 0
    %v266 = vsel %vm255, %v230, 0
    %268 = vmatprep.subr.mxu0 0.0
    %269 = vmatpush1.msra.mxu0 %v223
    %270 = vmatprep.subr.mxu0 0.0
    %271 = vmatpush1.msra.mxu0 %v224
    %272 = vmatprep.subr.mxu0 0.0
    %273 = vmatpush1.msra.mxu0 %v225
    %274 = vmatprep.subr.mxu0 0.0
    %275 = vmatpush1.msra.mxu0 %v226
    %276 = vmatprep.subr.mxu0 0.0
    %277 = vmatpush1.msra.mxu0 0.0
    %278 = vmatprep.subr.mxu0 0.0
    %279 = vmatpush1.msra.mxu0 0.0
    %280 = vmatprep.subr.mxu0 0.0
    %281 = vmatpush1.msra.mxu0 0.0
    %282 = vmatprep.subr.mxu0 0.0
    %283 = vmatpush1.msra.mxu0 0.0
    %284 = vmatprep.subr.mxu0 0.0
    %285 = vmatpush1.msra.mxu0 0.0
    %286 = vmatprep.subr.mxu0 0.0
    %287 = vmatpush1.msra.mxu0 0.0
    %288 = vmatprep.subr.mxu0 0.0
    %289 = vmatpush1.msra.mxu0 0.0
    %290 = vmatprep.subr.mxu0 0.0
    %291 = vmatpush1.msra.mxu0 0.0
    %292 = vmatprep.subr.mxu0 0.0
    %293 = vmatpush1.msra.mxu0 0.0
    %294 = vmatprep.subr.mxu0 0.0
    %295 = vmatpush1.msra.mxu0 0.0
    %296 = vmatprep.subr.mxu0 0.0
    %297 = vmatpush1.msra.mxu0 0.0
    %298 = vmatprep.subr.mxu0 0.0
    %299 = vmatpush1.msra.mxu0 0.0
    %300 = vmatprep.subr.mxu0 0.0
    %301 = vmatpush1.msra.mxu0 0.0
    %302 = vmatprep.subr.mxu0 0.0
    %303 = vmatpush1.msra.mxu0 0.0
    %304 = vmatprep.subr.mxu0 0.0
    %305 = vmatpush1.msra.mxu0 0.0
    %306 = vmatprep.subr.mxu0 0.0
    %307 = vmatpush1.msra.mxu0 0.0
    %308 = vmatprep.subr.mxu0 0.0
    %309 = vmatpush1.msra.mxu0 0.0
    %310 = vmatprep.subr.mxu0 0.0
    %311 = vmatpush1.msra.mxu0 0.0
    %312 = vmatprep.subr.mxu0 0.0
    %313 = vmatpush1.msra.mxu0 0.0
    %314 = vmatprep.subr.mxu0 0.0
    %315 = vmatpush1.msra.mxu0 0.0
    %316 = vmatprep.subr.mxu0 0.0
    %317 = vmatpush1.msra.mxu0 0.0
    %318 = vmatprep.subr.mxu0 0.0
    %319 = vmatpush1.msra.mxu0 0.0
    %320 = vmatprep.subr.mxu0 0.0
    %321 = vmatpush1.msra.mxu0 0.0
    %322 = vmatprep.subr.mxu0 0.0
    %323 = vmatpush1.msra.mxu0 0.0
    %324 = vmatprep.subr.mxu0 0.0
    %325 = vmatpush1.msra.mxu0 0.0
    %326 = vmatprep.subr.mxu0 0.0
    %327 = vmatpush1.msra.mxu0 0.0
    %328 = vmatprep.subr.mxu0 0.0
    %329 = vmatpush1.msra.mxu0 0.0
    %330 = vmatprep.subr.mxu0 0.0
    %331 = vmatpush1.msra.mxu0 0.0
    %332 = vmatprep.mubr.f32.mxu0 0.0
    %333 = vmatmul.mubr.f32.gmra.mrb[0].mxu0 %v257
    %v334 = vpop.f32.mrb[0].mxu0
    %v335 = vadd.f32 %v238, %v334
    %v336 = vpop.f32.mrb[0].mxu0
    %337 = vmatprep.mubr.f32.mxu0 0.0
    %338 = vmatmul.mubr.f32.gmra.mrb[0].mxu0 %v260
    %v339 = vpop.f32.mrb[0].mxu0
    %v340 = vadd.f32 %v243, %v339
    %v341 = vpop.f32.mrb[0].mxu0
    %342 = vmatprep.mubr.f32.mxu0 0.0
    %343 = vmatmul.mubr.f32.gmra.mrb[0].mxu0 %v263
    %v344 = vpop.f32.mrb[0].mxu0
    %v345 = vadd.f32 %v248, %v344
    %v346 = vpop.f32.mrb[0].mxu0
    %347 = vmatprep.mubr.f32.mxu0 0.0
    %348 = vmatmul.mubr.f32.gmra.mrb[0].mxu0 %v266
    %v349 = vpop.f32.mrb[0].mxu0
    %v350 = vadd.f32 %v253, %v349
    %v351 = vpop.f32.mrb[0].mxu0
    %352 = vdwg.mxu0
    %v353 = vmul.f32 %v335, 0.1
    %v354 = vmul.f32 %v340, 0.1
    %v355 = vmul.f32 %v345, 0.1
    %v356 = vmul.f32 %v350, 0.1
    %v357 = vmax.f32 %v335, %v353
    %v358 = vmax.f32 %v340, %v354
    %v359 = vmax.f32 %v345, %v355
    %v360 = vmax.f32 %v350, %v356
    %s361 = scalar_lea.vmem %s3, 32
    %v362 = vld [vmem:[%s361] sm:$0xff]
    %v363 = vld [vmem:[%s361 + $0x8] sm:$0xff]
    %v364 = vld [vmem:[%s361 + $0x10] sm:$0xff]
    %v365 = vld [vmem:[%s361 + $0x18] sm:$0xff]
    %s366 = scalar_lea.vmem %s4, 32
    %v367 = vld [vmem:[%s366] sm:$0xff]
    %v368 = vld [vmem:[%s366 + $0x8] sm:$0xff]
    %v369 = vld [vmem:[%s366 + $0x10] sm:$0xff]
    %v370 = vld [vmem:[%s366 + $0x18] sm:$0xff]
    %372 = vset.pattern.permute.xlu0 0
    %373 = vperm.xlu0 %372, %v367
    %v374 = vpop.permute.xlu0 %373
    %377 = vset.pattern.permute.xlu0 0
    %378 = vperm.xlu0 %377, %v368
    %v379 = vpop.permute.xlu0 %378
    %382 = vset.pattern.permute.xlu0 0
    %383 = vperm.xlu0 %382, %v369
    %v384 = vpop.permute.xlu0 %383
    %387 = vset.pattern.permute.xlu0 0
    %388 = vperm.xlu0 %387, %v370
    %v389 = vpop.permute.xlu0 %388
    %v392 = vsel %vm255, %v362, 0
    %v395 = vsel %vm255, %v363, 0
    %v398 = vsel %vm255, %v364, 0
    %v401 = vsel %vm255, %v365, 0
    %403 = vmatprep.subr.mxu0 0.0
    %404 = vmatpush1.msra.mxu0 %v357
    %405 = vmatprep.subr.mxu0 0.0
    %406 = vmatpush1.msra.mxu0 %v358
    %407 = vmatprep.subr.mxu0 0.0
    %408 = vmatpush1.msra.mxu0 %v359
    %409 = vmatprep.subr.mxu0 0.0
    %410 = vmatpush1.msra.mxu0 %v360
    %411 = vmatprep.subr.mxu0 0.0
    %412 = vmatpush1.msra.mxu0 0.0
    %413 = vmatprep.subr.mxu0 0.0
    %414 = vmatpush1.msra.mxu0 0.0
    %415 = vmatprep.subr.mxu0 0.0
    %416 = vmatpush1.msra.mxu0 0.0
    %417 = vmatprep.subr.mxu0 0.0
    %418 = vmatpush1.msra.mxu0 0.0
    %419 = vmatprep.subr.mxu0 0.0
    %420 = vmatpush1.msra.mxu0 0.0
    %421 = vmatprep.subr.mxu0 0.0
    %422 = vmatpush1.msra.mxu0 0.0
    %423 = vmatprep.subr.mxu0 0.0
    %424 = vmatpush1.msra.mxu0 0.0
    %425 = vmatprep.subr.mxu0 0.0
    %426 = vmatpush1.msra.mxu0 0.0
    %427 = vmatprep.subr.mxu0 0.0
    %428 = vmatpush1.msra.mxu0 0.0
    %429 = vmatprep.subr.mxu0 0.0
    %430 = vmatpush1.msra.mxu0 0.0
    %431 = vmatprep.subr.mxu0 0.0
    %432 = vmatpush1.msra.mxu0 0.0
    %433 = vmatprep.subr.mxu0 0.0
    %434 = vmatpush1.msra.mxu0 0.0
    %435 = vmatprep.subr.mxu0 0.0
    %436 = vmatpush1.msra.mxu0 0.0
    %437 = vmatprep.subr.mxu0 0.0
    %438 = vmatpush1.msra.mxu0 0.0
    %439 = vmatprep.subr.mxu0 0.0
    %440 = vmatpush1.msra.mxu0 0.0
    %441 = vmatprep.subr.mxu0 0.0
    %442 = vmatpush1.msra.mxu0 0.0
    %443 = vmatprep.subr.mxu0 0.0
    %444 = vmatpush1.msra.mxu0 0.0
    %445 = vmatprep.subr.mxu0 0.0
    %446 = vmatpush1.msra.mxu0 0.0
    %447 = vmatprep.subr.mxu0 0.0
    %448 = vmatpush1.msra.mxu0 0.0
    %449 = vmatprep.subr.mxu0 0.0
    %450 = vmatpush1.msra.mxu0 0.0
    %451 = vmatprep.subr.mxu0 0.0
    %452 = vmatpush1.msra.mxu0 0.0
    %453 = vmatprep.subr.mxu0 0.0
    %454 = vmatpush1.msra.mxu0 0.0
    %455 = vmatprep.subr.mxu0 0.0
    %456 = vmatpush1.msra.mxu0 0.0
    %457 = vmatprep.subr.mxu0 0.0
    %458 = vmatpush1.msra.mxu0 0.0
    %459 = vmatprep.subr.mxu0 0.0
    %460 = vmatpush1.msra.mxu0 0.0
    %461 = vmatprep.subr.mxu0 0.0
    %462 = vmatpush1.msra.mxu0 0.0
    %463 = vmatprep.subr.mxu0 0.0
    %464 = vmatpush1.msra.mxu0 0.0
    %465 = vmatprep.subr.mxu0 0.0
    %466 = vmatpush1.msra.mxu0 0.0
    %467 = vmatprep.mubr.f32.mxu0 0.0
    %468 = vmatmul.mubr.f32.gmra.mrb[0].mxu0 %v392
    %v469 = vpop.f32.mrb[0].mxu0
    %v470 = vadd.f32 %v374, %v469
    %v471 = vpop.f32.mrb[0].mxu0
    %472 = vmatprep.mubr.f32.mxu0 0.0
    %473 = vmatmul.mubr.f32.gmra.mrb[0].mxu0 %v395
    %v474 = vpop.f32.mrb[0].mxu0
    %v475 = vadd.f32 %v379, %v474
    %v476 = vpop.f32.mrb[0].mxu0
    %477 = vmatprep.mubr.f32.mxu0 0.0
    %478 = vmatmul.mubr.f32.gmra.mrb[0].mxu0 %v398
    %v479 = vpop.f32.mrb[0].mxu0
    %v480 = vadd.f32 %v384, %v479
    %v481 = vpop.f32.mrb[0].mxu0
    %482 = vmatprep.mubr.f32.mxu0 0.0
    %483 = vmatmul.mubr.f32.gmra.mrb[0].mxu0 %v401
    %v484 = vpop.f32.mrb[0].mxu0
    %v485 = vadd.f32 %v389, %v484
    %v486 = vpop.f32.mrb[0].mxu0
    %487 = vdwg.mxu0
    %v488 = vmul.f32 %v470, 0.1
    %v489 = vmul.f32 %v475, 0.1
    %v490 = vmul.f32 %v480, 0.1
    %v491 = vmul.f32 %v485, 0.1
    %v492 = vmax.f32 %v470, %v488
    %v493 = vmax.f32 %v475, %v489
    %v494 = vmax.f32 %v480, %v490
    %v495 = vmax.f32 %v485, %v491
    %v496 = vld [vmem:[%s5] sm:$0xff]
    %v497 = vld [vmem:[%s5 + $0x8] sm:$0xff]
    %v498 = vld [vmem:[%s5 + $0x10] sm:$0xff]
    %v499 = vld [vmem:[%s5 + $0x18] sm:$0xff]
    %501 = vset.pattern.permute.xlu0 0
    %502 = vperm.xlu0 %501, %v496
    %v503 = vpop.permute.xlu0 %502
    %506 = vset.pattern.permute.xlu0 0
    %507 = vperm.xlu0 %506, %v497
    %v508 = vpop.permute.xlu0 %507
    %511 = vset.pattern.permute.xlu0 0
    %512 = vperm.xlu0 %511, %v498
    %v513 = vpop.permute.xlu0 %512
    %516 = vset.pattern.permute.xlu0 0
    %517 = vperm.xlu0 %516, %v499
    %v518 = vpop.permute.xlu0 %517
    %v520 = vmul.f32 %v503, %v492
    %v521 = vmul.f32 %v508, %v493
    %v522 = vmul.f32 %v513, %v494
    %v523 = vmul.f32 %v518, %v495
    %v524 = vadd.f32 %v520, %v521
    %v525 = vadd.f32 %v524, %v522
    %v526 = vadd.f32 %v525, %v523
    %v527 = vrot.slane %v526, 4
    %v528 = vadd.f32 %v526, %v527
    %v529 = vrot.slane %v528, 2
    %v530 = vadd.f32 %v528, %v529
    %v531 = vrot.slane %v530, 1
    %v532 = vadd.f32 %v530, %v531
    %v533 = vld [vmem:[#allocation2] sm:$0x1]
    %535 = vset.pattern.permute.xlu0 0
    %536 = vperm.xlu0 %535, %v533
    %v537 = vpop.permute.xlu0 %536
    %v539 = vlaneseq
    %v540 = vshrl.u32 %v539, 7
    %v541 = vsub.s32 0, %v540
    %v542 = vrot.slane %v537, %v541
    %v543 = vadd.f32 %v532, %v542
    %544 = vst [vmem:[#allocation3] sm:$0x1] %v543
    // Predicated region
    $region30: #{tpu_custom_call.1} parent=1 // pred_check
      _
    $region31: #{tpu_custom_call.1} parent=1 // pred_check_branch
      %546 = sbr.rel (0) target = $region33
    $region32: #{tpu_custom_call.1} parent=1 // pred_region
      %s548 = ssub.s32 16, 16
      %549 = vsyncadd [#allocation4], %s548
      %s551 = sshll.u32 [#allocation3], 4
      %s552 = int_to_ptr.vmem [resolvable:$true] %s551
      %554 = dma.vmem_to_hbm [thread:$0]  %s552, 16, %s7, [#allocation4]
    $region33: #{tpu_custom_call.1} parent=1 // pred_fallthru
      _
    // Predicated region
    $region34: #{tpu_custom_call.1} parent=1 // pred_check
      _
    $region35: #{tpu_custom_call.1} parent=1 // pred_check_branch
      %556 = sbr.rel (0) target = $region37
    $region36: #{tpu_custom_call.1} parent=1 // pred_region
      %557 = dma.done [#allocation4], 16
    $region37: #{tpu_custom_call.1} parent=1 // pred_fallthru
      _
    %558 = vsyncpa [#allocation4], 1

</llo_original>
